<compile_context>
chip_gen: v5e
topology: v5e:2x2
jax: 0.10.0
libtpu: 0.0.40
codegen_flags: <defaults>
</compile_context>

<pallas_src>
import functools

import jax
import jax.numpy as jnp
from jax.experimental import pallas as pl
from jax.experimental.pallas import tpu as pltpu

_BN_EPS = 1e-5
_FUSED_BYTES_BUDGET = 12 << 20   # fused (whole-graph-resident) path threshold
_TILED_VMEM_BUDGET = 40 << 20    # stay well under v7x's 64 MiB physical VMEM


# ---------------------------------------------------------------------------
# VMEM budgeting helpers
# ---------------------------------------------------------------------------
def _padded_bytes(shape, dtype):
    """(8,128)-tile-padded byte size of one VMEM-resident array."""
    itemsize = jnp.dtype(dtype).itemsize
    if len(shape) == 0:
        return itemsize
    if len(shape) == 1:
        return max(shape[0], 128) * itemsize
    sub = 8 if itemsize >= 4 else 32 // itemsize     # 8 for f32, 16 for bf16
    lead = 1
    for d in shape[:-2]:
        lead *= d
    rows = -(-shape[-2] // sub) * sub
    cols = -(-shape[-1] // 128) * 128
    return lead * rows * cols * itemsize


def _vmem_limit(shapes_dtypes):
    need = sum(_padded_bytes(s, d) for s, d in shapes_dtypes)
    # ~3x margin for double-buffering / compiler temporaries, clipped to stay
    # well under the smallest per-core VMEM (v7x: 64 MiB physical).
    return int(min(max(3 * need, 8 << 20), _TILED_VMEM_BUDGET))


def _full_spec(shape):
    # Whole array resident in VMEM as a single block (no grid).
    return pl.BlockSpec(shape, lambda: tuple(0 for _ in shape))


# ---------------------------------------------------------------------------
# Shared in-kernel layer math
# ---------------------------------------------------------------------------
def _sage_hidden_merged(adj, x_all, x_root, w_ref, b_ref, cat_ref):
    """SAGEConv (+ folded BN) + ReLU.

    adj:    (R, N) bf16 value      x_all: (N, C_in) f32 value
    x_root: (R, C_in) f32 value    w_ref: (2*C_in, C_out) stacked [Wl; Wr]
    cat_ref: (R, >=2*C_in) f32 VMEM scratch used to build [agg | x_root].
    """
    c_in = x_root.shape[1]
    agg = jnp.dot(adj, x_all.astype(adj.dtype),
                  preferred_element_type=jnp.float32)
    cat_ref[:, :c_in] = agg
    cat_ref[:, c_in:2 * c_in] = x_root
    hc = cat_ref[:, :2 * c_in]
    h = jnp.dot(hc, w_ref[...], preferred_element_type=jnp.float32) + b_ref[...]
    return jnp.maximum(h, 0.0)


def _sage_final(adj, x_all, x_root, wl_ref, wr_ref, b_ref, reorder):
    """Final SAGEConv + log_softmax over the class (lane) axis."""
    if reorder:  # A @ (x @ Wl): exact; shrinks the big matmul when C_out < C_in
        p = jnp.dot(x_all, wl_ref[...], preferred_element_type=jnp.float32)
        h = jnp.dot(adj, p.astype(adj.dtype), preferred_element_type=jnp.float32)
    else:
        agg = jnp.dot(adj, x_all.astype(adj.dtype),
                      preferred_element_type=jnp.float32)
        h = jnp.dot(agg, wl_ref[...], preferred_element_type=jnp.float32)
    h = h + jnp.dot(x_root, wr_ref[...], preferred_element_type=jnp.float32)
    h = h + b_ref[...]
    m = jnp.max(h, axis=1, keepdims=True)
    z = h - m
    return z - jnp.log(jnp.sum(jnp.exp(z), axis=1, keepdims=True))


# ---------------------------------------------------------------------------
# Path 1: whole forward fused into a single pallas_call (small graphs)
# ---------------------------------------------------------------------------
def _fused_kernel(num_hidden, reorder_last, *refs):
    adj_ref, x_ref = refs[0], refs[1]
    wb_refs = refs[2:2 + 2 * num_hidden]
    wl_ref, wr_ref, bl_ref = refs[2 + 2 * num_hidden:2 + 2 * num_hidden + 3]
    o_ref, cat_ref = refs[-2], refs[-1]

    adj = adj_ref[...]          # bf16, resident once for all layers
    h = x_ref[...]              # f32
    for li in range(num_hidden):
        h = _sage_hidden_merged(adj, h, h, wb_refs[2 * li], wb_refs[2 * li + 1],
                                cat_ref)
    o_ref[...] = _sage_final(adj, h, h, wl_ref, wr_ref, bl_ref, reorder_last)


def graphsage_fused_call(adj, x, hidden_wb, last_wlb):
    n = adj.shape[0]
    wl, wr, bl = last_wlb
    c_out = wl.shape[1]
    num_hidden = len(hidden_wb)
    reorder = c_out < wl.shape[0]
    cat_w = max(w.shape[0] for w, _ in hidden_wb) if num_hidden else 8

    inputs = [adj, x]
    for w, b in hidden_wb:
        inputs += [w, b]
    inputs += [wl, wr, bl]

    vmem = _vmem_limit([(a.shape, a.dtype) for a in inputs]
                       + [((n, c_out), jnp.float32), ((n, cat_w), jnp.float32)])

    kernel = functools.partial(_fused_kernel, num_hidden, reorder)
    return pl.pallas_call(
        kernel,
        out_shape=jax.ShapeDtypeStruct((n, c_out), jnp.float32),
        in_specs=[_full_spec(a.shape) for a in inputs],
        out_specs=_full_spec((n, c_out)),
        scratch_shapes=[pltpu.VMEM((n, cat_w), jnp.float32)],
        compiler_params=pltpu.CompilerParams(vmem_limit_bytes=vmem),
    )(*inputs)


# ---------------------------------------------------------------------------
# Path 2: row-tiled per-layer kernels (larger graphs), parallel grid
# ---------------------------------------------------------------------------
def _hidden_tiled_kernel(tm, adj_ref, x_ref, w_ref, b_ref, o_ref, cat_ref):
    row0 = pl.multiple_of(pl.program_id(0) * tm, tm)
    x_root = x_ref[pl.ds(row0, tm), :]
    o_ref[...] = _sage_hidden_merged(adj_ref[...], x_ref[...], x_root,
                                     w_ref, b_ref, cat_ref)


def _last_tiled_kernel(tm, reorder, adj_ref, x_ref, wl_ref, wr_ref, b_ref,
                       o_ref):
    row0 = pl.multiple_of(pl.program_id(0) * tm, tm)
    x_root = x_ref[pl.ds(row0, tm), :]
    o_ref[...] = _sage_final(adj_ref[...], x_ref[...], x_root,
                             wl_ref, wr_ref, b_ref, reorder)


def sage_hidden_tiled(adj, x, w, b, tm):
    n = adj.shape[0]
    c_in = x.shape[1]
    c_out = w.shape[1]
    vmem = _vmem_limit([((tm, n), adj.dtype), ((n, c_in), x.dtype),
                        (w.shape, w.dtype), (b.shape, b.dtype),
                        ((tm, c_out), jnp.float32),
                        ((tm, 2 * c_in), jnp.float32)])
    return pl.pallas_call(
        functools.partial(_hidden_tiled_kernel, tm),
        out_shape=jax.ShapeDtypeStruct((n, c_out), jnp.float32),
        grid=(n // tm,),
        in_specs=[pl.BlockSpec((tm, n), lambda i: (i, 0)),
                  pl.BlockSpec((n, c_in), lambda i: (0, 0)),
                  pl.BlockSpec((2 * c_in, c_out), lambda i: (0, 0)),
                  pl.BlockSpec((1, c_out), lambda i: (0, 0))],
        out_specs=pl.BlockSpec((tm, c_out), lambda i: (i, 0)),
        scratch_shapes=[pltpu.VMEM((tm, 2 * c_in), jnp.float32)],
        compiler_params=pltpu.CompilerParams(
            dimension_semantics=("parallel",), vmem_limit_bytes=vmem),
    )(adj, x, w, b)


def sage_last_tiled(adj, x, wl, wr, b, tm):
    n = adj.shape[0]
    c_in = x.shape[1]
    c_out = wl.shape[1]
    reorder = c_out < c_in
    vmem = _vmem_limit([((tm, n), adj.dtype), ((n, c_in), x.dtype),
                        (wl.shape, wl.dtype), (wr.shape, wr.dtype),
                        (b.shape, b.dtype),
                        ((n, c_out), jnp.float32),
                        ((tm, c_out), jnp.float32)])
    return pl.pallas_call(
        functools.partial(_last_tiled_kernel, tm, reorder),
        out_shape=jax.ShapeDtypeStruct((n, c_out), jnp.float32),
        grid=(n // tm,),
        in_specs=[pl.BlockSpec((tm, n), lambda i: (i, 0)),
                  pl.BlockSpec((n, c_in), lambda i: (0, 0)),
                  pl.BlockSpec((c_in, c_out), lambda i: (0, 0)),
                  pl.BlockSpec((c_in, c_out), lambda i: (0, 0)),
                  pl.BlockSpec((1, c_out), lambda i: (0, 0))],
        out_specs=pl.BlockSpec((tm, c_out), lambda i: (i, 0)),
        compiler_params=pltpu.CompilerParams(
            dimension_semantics=("parallel",), vmem_limit_bytes=vmem),
    )(adj, x, wl, wr, b)


def _pick_tm(n, c_max, budget=_TILED_VMEM_BUDGET):
    """Largest row-tile TM dividing N that fits the VMEM budget (>=2 tiles)."""
    for tm in (512, 256, 128, 64, 32, 16):
        if tm > max(16, n // 2) or n % tm:
            continue
        c_pad = max(c_max, 128)
        need = (2 * tm * n * 2            # double-buffered bf16 adjacency tile
                + 2 * n * c_pad * 4       # resident node features
                + 4 * tm * c_pad * 4)     # output tile + scratch
        if need <= budget:
            return tm
    return None


# ---------------------------------------------------------------------------
# Plain-JAX glue: adjacency, parameter init/prep, dispatch, reference
# ---------------------------------------------------------------------------
def build_mean_adjacency(edge_index, num_nodes):
    """Dense row-normalized adjacency for PyG-style mean aggregation."""
    src, dst = edge_index[0], edge_index[1]
    adj = jnp.zeros((num_nodes, num_nodes), jnp.float32)
    adj = adj.at[dst, src].add(1.0)
    deg = jnp.sum(adj, axis=1, keepdims=True)
    return adj / jnp.maximum(deg, 1.0)


def init_params(key, in_channels, hidden_channels, out_channels, num_layers):
    dims = ([in_channels] + [hidden_channels] * (num_layers - 1)
            + [out_channels])
    params = []
    for li in range(num_layers):
        c_in, c_out = dims[li], dims[li + 1]
        key, k1, k2, k3 = jax.random.split(key, 4)
        layer = {
            # stored pre-transposed as [c_in, c_out] so kernels do x @ W
            "wl": 0.1 * jax.random.normal(k1, (c_in, c_out), jnp.float32),
            "bl": 0.1 * jax.random.normal(k2, (1, c_out), jnp.float32),
            "wr": 0.1 * jax.random.normal(k3, (c_in, c_out), jnp.float32),
        }
        if li < num_layers - 1:  # hidden layers carry BatchNorm1d
            key, k4, k5, k6, k7 = jax.random.split(key, 5)
            layer["gamma"] = 1.0 + 0.1 * jax.random.normal(k4, (1, c_out))
            layer["beta"] = 0.1 * jax.random.normal(k5, (1, c_out))
            layer["mean"] = 0.1 * jax.random.normal(k6, (1, c_out))
            layer["var"] = jnp.abs(jax.random.normal(k7, (1, c_out))) + 0.5
        params.append(layer)
    return params


def prep_params(params, eps=_BN_EPS):
    """Fold eval-mode BN into the SAGE weights and stack [Wl; Wr]."""
    hidden = []
    for layer in params[:-1]:
        s = layer["gamma"] * jax.lax.rsqrt(layer["var"] + eps)
        wl = layer["wl"] * s
        wr = layer["wr"] * s
        b = layer["bl"] * s + layer["beta"] - layer["mean"] * s
        hidden.append((jnp.concatenate([wl, wr], axis=0), b))
    last = params[-1]
    return hidden, (last["wl"], last["wr"], last["bl"])


@functools.partial(jax.jit, static_argnames=("num_nodes", "force_tiled"))
def graphsage_forward(x, edge_index, params, num_nodes, force_tiled=False):
    adj = build_mean_adjacency(edge_index, num_nodes).astype(jnp.bfloat16)
    hidden_wb, last_wlb = prep_params(params)
    wl, wr, bl = last_wlb
    c_out = wl.shape[1]
    cat_w = max(w.shape[0] for w, _ in hidden_wb) if hidden_wb else 8

    fused_inputs = ([(adj.shape, adj.dtype), (x.shape, x.dtype)]
                    + [(a.shape, a.dtype) for w, b in hidden_wb for a in (w, b)]
                    + [(wl.shape, wl.dtype), (wr.shape, wr.dtype),
                       (bl.shape, bl.dtype),
                       ((num_nodes, c_out), jnp.float32),
                       ((num_nodes, cat_w), jnp.float32)])
    fused_need = sum(_padded_bytes(s, d) for s, d in fused_inputs)

    if (not force_tiled) and fused_need <= _FUSED_BYTES_BUDGET:
        return graphsage_fused_call(adj, x, hidden_wb, last_wlb)

    # Row-tiled per-layer path.
    c_max = max([x.shape[1], c_out] + [w.shape[1] for w, _ in hidden_wb])
    tm = _pick_tm(num_nodes, c_max)
    if tm is None:
        # TODO(synk): graphs too large for resident features need the
        # scalar-prefetch sparse-gather formulation.
        raise ValueError("graph too large for the dense-adjacency kernels")
    h = x
    for w, b in hidden_wb:
        h = sage_hidden_tiled(adj, h, w, b, tm)
    return sage_last_tiled(adj, h, wl, wr, bl, tm)


def ref_forward(x, edge_index, params, num_nodes):
    """Pure-JAX f32 reference (unfolded BN, unfused)."""
    adj = build_mean_adjacency(edge_index, num_nodes)
    h = x
    for layer in params[:-1]:
        z = (adj @ h) @ layer["wl"] + layer["bl"] + h @ layer["wr"]
        z = ((z - layer["mean"]) * jax.lax.rsqrt(layer["var"] + _BN_EPS)
             * layer["gamma"] + layer["beta"])
        h = jnp.maximum(z, 0.0)
    last = params[-1]
    z = (adj @ h) @ last["wl"] + last["bl"] + h @ last["wr"]
    return jax.nn.log_softmax(z, axis=1)


if __name__ == "__main__":
    IN_CH, HIDDEN_CH, OUT_CH, NUM_LAYERS = 16, 32, 8, 3

    key = jax.random.PRNGKey(0)
    key, kp = jax.random.split(key)
    params = init_params(kp, IN_CH, HIDDEN_CH, OUT_CH, NUM_LAYERS)

    # --- Case 1: small graph -> single fused kernel ------------------------
    n1, e1 = 64, 256
    key, kx1, ke1 = jax.random.split(key, 3)
    x1 = jax.random.normal(kx1, (n1, IN_CH), jnp.float32)
    ei1 = jax.random.randint(ke1, (2, e1), 0, n1, jnp.int32)

    out1 = graphsage_forward(x1, ei1, params, num_nodes=n1)
    jax.block_until_ready(out1)
    ref1 = ref_forward(x1, ei1, params, n1)
    assert out1.shape == (n1, OUT_CH)
    assert bool(jnp.all(jnp.abs(jnp.exp(out1).sum(axis=1) - 1.0) < 1e-4))
    assert bool(jnp.max(jnp.abs(out1 - ref1)) < 5e-2)

    # --- Case 2: larger graph -> row-tiled per-layer kernels ----------------
    n2, e2 = 256, 1024
    key, kx2, ke2 = jax.random.split(key, 3)
    x2 = jax.random.normal(kx2, (n2, IN_CH), jnp.float32)
    ei2 = jax.random.randint(ke2, (2, e2), 0, n2, jnp.int32)

    out2 = graphsage_forward(x2, ei2, params, num_nodes=n2, force_tiled=True)
    jax.block_until_ready(out2)
    ref2 = ref_forward(x2, ei2, params, n2)
    assert out2.shape == (n2, OUT_CH)
    assert bool(jnp.all(jnp.abs(jnp.exp(out2).sum(axis=1) - 1.0) < 1e-4))
    assert bool(jnp.max(jnp.abs(out2 - ref2)) < 5e-2)

    print("KERNEL_OK")
</pallas_src>

<mosaic_0001>
module attributes {stable_mosaic.version = 11 : i64} {
  func.func @_fused_kernel(%arg0: memref<64x64xbf16, #tpu.memory_space<vmem>>, %arg1: memref<64x16xf32, #tpu.memory_space<vmem>>, %arg2: memref<32x32xf32, #tpu.memory_space<vmem>>, %arg3: memref<1x32xf32, #tpu.memory_space<vmem>>, %arg4: memref<64x32xf32, #tpu.memory_space<vmem>>, %arg5: memref<1x32xf32, #tpu.memory_space<vmem>>, %arg6: memref<32x8xf32, #tpu.memory_space<vmem>>, %arg7: memref<32x8xf32, #tpu.memory_space<vmem>>, %arg8: memref<1x8xf32, #tpu.memory_space<vmem>>, %arg9: memref<64x8xf32, #tpu.memory_space<vmem>>, %arg10: memref<64x64xf32, #tpu.memory_space<vmem>>) attributes {dimension_semantics = [], scalar_prefetch = 0 : i64, scratch_operands = 1 : i64, tpu.core_type = #tpu.core_type<tc>} {
    %c0 = arith.constant 0 : index
    %c0_0 = arith.constant 0 : index
    %0 = vector.load %arg0[%c0, %c0_0] : memref<64x64xbf16, #tpu.memory_space<vmem>>, vector<64x64xbf16>
    %c0_1 = arith.constant 0 : index
    %c0_2 = arith.constant 0 : index
    %1 = vector.load %arg1[%c0_1, %c0_2] : memref<64x16xf32, #tpu.memory_space<vmem>>, vector<64x16xf32>
    %2 = arith.truncf %1 : vector<64x16xf32> to vector<64x16xbf16>
    %cst = arith.constant dense<0.000000e+00> : vector<64x16xf32>
    %3 = tpu.matmul %0, %2, %cst {dimension_numbers = #tpu.dot_dimension_numbers<[1], [0], [0], [1], [0, 0, 1, 1], [], []>} : vector<64x64xbf16>, vector<64x16xbf16>, vector<64x16xf32> -> vector<64x16xf32>
    %c0_3 = arith.constant 0 : index
    %c0_4 = arith.constant 0 : index
    %4 = vector.load %arg10[%c0_3, %c0_4] : memref<64x64xf32, #tpu.memory_space<vmem>>, vector<64x16xf32>
    tpu.vector_store %arg10[%c0_3, %c0_4], %3 {strides = array<i32>} : memref<64x64xf32, #tpu.memory_space<vmem>>, vector<64x16xf32>,
    %c0_5 = arith.constant 0 : index
    %c16 = arith.constant 16 : index
    %5 = vector.load %arg10[%c0_5, %c16] : memref<64x64xf32, #tpu.memory_space<vmem>>, vector<64x16xf32>
    tpu.vector_store %arg10[%c0_5, %c16], %1 {strides = array<i32>} : memref<64x64xf32, #tpu.memory_space<vmem>>, vector<64x16xf32>,
    %c0_6 = arith.constant 0 : index
    %c0_7 = arith.constant 0 : index
    %6 = vector.load %arg10[%c0_6, %c0_7] : memref<64x64xf32, #tpu.memory_space<vmem>>, vector<64x32xf32>
    %c0_8 = arith.constant 0 : index
    %c0_9 = arith.constant 0 : index
    %7 = vector.load %arg2[%c0_8, %c0_9] : memref<32x32xf32, #tpu.memory_space<vmem>>, vector<32x32xf32>
    %cst_10 = arith.constant dense<0.000000e+00> : vector<64x32xf32>
    %8 = tpu.matmul %6, %7, %cst_10 {dimension_numbers = #tpu.dot_dimension_numbers<[1], [0], [0], [1], [0, 0, 1, 1], [], []>} : vector<64x32xf32>, vector<32x32xf32>, vector<64x32xf32> -> vector<64x32xf32>
    %c0_11 = arith.constant 0 : index
    %c0_12 = arith.constant 0 : index
    %9 = vector.load %arg3[%c0_11, %c0_12] : memref<1x32xf32, #tpu.memory_space<vmem>>, vector<1x32xf32>
    %10 = vector.broadcast %9 : vector<1x32xf32> to vector<64x32xf32>
    %11 = arith.addf %8, %10 : vector<64x32xf32>
    %cst_13 = arith.constant 0.000000e+00 : f32
    %12 = vector.broadcast %cst_13 : f32 to vector<64x32xf32>
    %13 = arith.maximumf %11, %12 : vector<64x32xf32>
    %14 = arith.truncf %13 : vector<64x32xf32> to vector<64x32xbf16>
    %cst_14 = arith.constant dense<0.000000e+00> : vector<64x32xf32>
    %15 = tpu.matmul %0, %14, %cst_14 {dimension_numbers = #tpu.dot_dimension_numbers<[1], [0], [0], [1], [0, 0, 1, 1], [], []>} : vector<64x64xbf16>, vector<64x32xbf16>, vector<64x32xf32> -> vector<64x32xf32>
    %c0_15 = arith.constant 0 : index
    %c0_16 = arith.constant 0 : index
    %16 = vector.load %arg10[%c0_15, %c0_16] : memref<64x64xf32, #tpu.memory_space<vmem>>, vector<64x32xf32>
    tpu.vector_store %arg10[%c0_15, %c0_16], %15 {strides = array<i32>} : memref<64x64xf32, #tpu.memory_space<vmem>>, vector<64x32xf32>,
    %c0_17 = arith.constant 0 : index
    %c32 = arith.constant 32 : index
    %17 = vector.load %arg10[%c0_17, %c32] : memref<64x64xf32, #tpu.memory_space<vmem>>, vector<64x32xf32>
    tpu.vector_store %arg10[%c0_17, %c32], %13 {strides = array<i32>} : memref<64x64xf32, #tpu.memory_space<vmem>>, vector<64x32xf32>,
    %c0_18 = arith.constant 0 : index
    %c0_19 = arith.constant 0 : index
    %18 = vector.load %arg10[%c0_18, %c0_19] : memref<64x64xf32, #tpu.memory_space<vmem>>, vector<64x64xf32>
    %c0_20 = arith.constant 0 : index
    %c0_21 = arith.constant 0 : index
    %19 = vector.load %arg4[%c0_20, %c0_21] : memref<64x32xf32, #tpu.memory_space<vmem>>, vector<64x32xf32>
    %cst_22 = arith.constant dense<0.000000e+00> : vector<64x32xf32>
    %20 = tpu.matmul %18, %19, %cst_22 {dimension_numbers = #tpu.dot_dimension_numbers<[1], [0], [0], [1], [0, 0, 1, 1], [], []>} : vector<64x64xf32>, vector<64x32xf32>, vector<64x32xf32> -> vector<64x32xf32>
    %c0_23 = arith.constant 0 : index
    %c0_24 = arith.constant 0 : index
    %21 = vector.load %arg5[%c0_23, %c0_24] : memref<1x32xf32, #tpu.memory_space<vmem>>, vector<1x32xf32>
    %22 = vector.broadcast %21 : vector<1x32xf32> to vector<64x32xf32>
    %23 = arith.addf %20, %22 : vector<64x32xf32>
    %cst_25 = arith.constant 0.000000e+00 : f32
    %24 = vector.broadcast %cst_25 : f32 to vector<64x32xf32>
    %25 = arith.maximumf %23, %24 : vector<64x32xf32>
    %c0_26 = arith.constant 0 : index
    %c0_27 = arith.constant 0 : index
    %26 = vector.load %arg6[%c0_26, %c0_27] : memref<32x8xf32, #tpu.memory_space<vmem>>, vector<32x8xf32>
    %cst_28 = arith.constant dense<0.000000e+00> : vector<64x8xf32>
    %27 = tpu.matmul %25, %26, %cst_28 {dimension_numbers = #tpu.dot_dimension_numbers<[1], [0], [0], [1], [0, 0, 1, 1], [], []>} : vector<64x32xf32>, vector<32x8xf32>, vector<64x8xf32> -> vector<64x8xf32>
    %28 = arith.truncf %27 : vector<64x8xf32> to vector<64x8xbf16>
    %cst_29 = arith.constant dense<0.000000e+00> : vector<64x8xf32>
    %29 = tpu.matmul %0, %28, %cst_29 {dimension_numbers = #tpu.dot_dimension_numbers<[1], [0], [0], [1], [0, 0, 1, 1], [], []>} : vector<64x64xbf16>, vector<64x8xbf16>, vector<64x8xf32> -> vector<64x8xf32>
    %c0_30 = arith.constant 0 : index
    %c0_31 = arith.constant 0 : index
    %30 = vector.load %arg7[%c0_30, %c0_31] : memref<32x8xf32, #tpu.memory_space<vmem>>, vector<32x8xf32>
    %cst_32 = arith.constant dense<0.000000e+00> : vector<64x8xf32>
    %31 = tpu.matmul %25, %30, %cst_32 {dimension_numbers = #tpu.dot_dimension_numbers<[1], [0], [0], [1], [0, 0, 1, 1], [], []>} : vector<64x32xf32>, vector<32x8xf32>, vector<64x8xf32> -> vector<64x8xf32>
    %32 = arith.addf %29, %31 : vector<64x8xf32>
    %c0_33 = arith.constant 0 : index
    %c0_34 = arith.constant 0 : index
    %33 = vector.load %arg8[%c0_33, %c0_34] : memref<1x8xf32, #tpu.memory_space<vmem>>, vector<1x8xf32>
    %34 = vector.broadcast %33 : vector<1x8xf32> to vector<64x8xf32>
    %35 = arith.addf %32, %34 : vector<64x8xf32>
    %cst_35 = arith.constant dense<0xFF800000> : vector<64xf32>
    %36 = vector.multi_reduction <maximumf>, %35, %cst_35 [1] : vector<64x8xf32> to vector<64xf32>
    %37 = vector.shape_cast %36 : vector<64xf32> to vector<64x1xf32>
    %38 = vector.broadcast %37 : vector<64x1xf32> to vector<64x8xf32>
    %39 = arith.subf %35, %38 : vector<64x8xf32>
    %40 = math.exp %39 : vector<64x8xf32>
    %cst_36 = arith.constant dense<0.000000e+00> : vector<64xf32>
    %41 = vector.multi_reduction <add>, %40, %cst_36 [1] : vector<64x8xf32> to vector<64xf32>
    %42 = vector.shape_cast %41 : vector<64xf32> to vector<64x1xf32>
    %43 = math.log %42 : vector<64x1xf32>
    %44 = vector.broadcast %43 : vector<64x1xf32> to vector<64x8xf32>
    %45 = arith.subf %39, %44 : vector<64x8xf32>
    %c0_37 = arith.constant 0 : index
    %c0_38 = arith.constant 0 : index
    %46 = vector.load %arg9[%c0_37, %c0_38] : memref<64x8xf32, #tpu.memory_space<vmem>>, vector<64x8xf32>
    tpu.vector_store %arg9[%c0_37, %c0_38], %45 {strides = array<i32>} : memref<64x8xf32, #tpu.memory_space<vmem>>, vector<64x8xf32>,
    return
  }
}

</mosaic_0001>

<llo_original>
// kernel: graphsage_forward.1
$region0: #{graphsage_forward.1}
  #allocation0 [shape = 'u32[]', space=smem, size = 0x4, offset = 0x4, fixed_abs, tag = 'smem constant byte address 0x4 - core index']
  #allocation1 [shape = 'u32[72,128]{1,0:T(1,128)}', space=vmem, size = 0x9000, scoped, tag = 'internal scratch']
  #allocation2 [shape = 'f32[64,64]{1,0:T(8,128)}', space=vmem, size = 0x8000, scoped, tag = 'scratch operand']
  %s0 = inlined_call_operand.vmem [shape: bf16[64,64], index: 0, kind: input, shape index: {}]
  %s1 = inlined_call_operand.vmem [shape: f32[64,16], index: 1, kind: input, shape index: {}]
  %s2 = inlined_call_operand.vmem [shape: f32[32,32], index: 2, kind: input, shape index: {}]
  %s3 = inlined_call_operand.vmem [shape: f32[1,32], index: 3, kind: input, shape index: {}]
  %s4 = inlined_call_operand.vmem [shape: f32[64,32], index: 4, kind: input, shape index: {}]
  %s5 = inlined_call_operand.vmem [shape: f32[1,32], index: 5, kind: input, shape index: {}]
  %s6 = inlined_call_operand.vmem [shape: f32[32,8], index: 6, kind: input, shape index: {}]
  %s7 = inlined_call_operand.vmem [shape: f32[32,8], index: 7, kind: input, shape index: {}]
  %s8 = inlined_call_operand.vmem [shape: f32[1,8], index: 8, kind: input, shape index: {}]
  %s9 = inlined_call_operand.vmem [shape: f32[64,8], index: 9, kind: output, shape index: {}]
  %s10 = sld [smem:[#allocation0]]
  $region46: #{graphsage_forward.1} parent=0
    _
  %s12 = ssub.s32 1, %s10
  %s13 = scalar_select 0, %s12, %s10
  // Predicated region
  $region2: #{graphsage_forward.1} parent=0 // pred_check
    _
  $region3: #{graphsage_forward.1} parent=0 // pred_check_branch
    %15 = sbr.rel (0) target = $region5
  $region4: #{graphsage_forward.1} parent=0 // pred_region
    _
  $region5: #{graphsage_forward.1} parent=0 // pred_fallthru
    _
  // Predicated region
  $region6: #{graphsage_forward.1} parent=0 // pred_check
    _
  $region7: #{graphsage_forward.1} parent=0 // pred_check_branch
    %17 = sbr.rel (0) target = $region9
  $region8: #{graphsage_forward.1} parent=0 // pred_region
    _
  $region9: #{graphsage_forward.1} parent=0 // pred_fallthru
    _
  // Predicated region
  $region10: #{graphsage_forward.1} parent=0 // pred_check
    _
  $region11: #{graphsage_forward.1} parent=0 // pred_check_branch
    %19 = sbr.rel (0) target = $region13
  $region12: #{graphsage_forward.1} parent=0 // pred_region
    _
  $region13: #{graphsage_forward.1} parent=0 // pred_fallthru
    _
  // Predicated region
  $region14: #{graphsage_forward.1} parent=0 // pred_check
    _
  $region15: #{graphsage_forward.1} parent=0 // pred_check_branch
    %21 = sbr.rel (0) target = $region17
  $region16: #{graphsage_forward.1} parent=0 // pred_region
    _
  $region17: #{graphsage_forward.1} parent=0 // pred_fallthru
    _
  // Predicated region
  $region18: #{graphsage_forward.1} parent=0 // pred_check
    _
  $region19: #{graphsage_forward.1} parent=0 // pred_check_branch
    %23 = sbr.rel (0) target = $region21
  $region20: #{graphsage_forward.1} parent=0 // pred_region
    _
  $region21: #{graphsage_forward.1} parent=0 // pred_fallthru
    _
  // Predicated region
  $region22: #{graphsage_forward.1} parent=0 // pred_check
    _
  $region23: #{graphsage_forward.1} parent=0 // pred_check_branch
    %25 = sbr.rel (0) target = $region25
  $region24: #{graphsage_forward.1} parent=0 // pred_region
    _
  $region25: #{graphsage_forward.1} parent=0 // pred_fallthru
    _
  // Predicated region
  $region26: #{graphsage_forward.1} parent=0 // pred_check
    _
  $region27: #{graphsage_forward.1} parent=0 // pred_check_branch
    %27 = sbr.rel (0) target = $region29
  $region28: #{graphsage_forward.1} parent=0 // pred_region
    _
  $region29: #{graphsage_forward.1} parent=0 // pred_fallthru
    _
  // Predicated region
  $region30: #{graphsage_forward.1} parent=0 // pred_check
    _
  $region31: #{graphsage_forward.1} parent=0 // pred_check_branch
    %29 = sbr.rel (0) target = $region33
  $region32: #{graphsage_forward.1} parent=0 // pred_region
    _
  $region33: #{graphsage_forward.1} parent=0 // pred_fallthru
    _
  // Predicated region
  $region34: #{graphsage_forward.1} parent=0 // pred_check
    _
  $region35: #{graphsage_forward.1} parent=0 // pred_check_branch
    %31 = sbr.rel (0) target = $region37
  $region36: #{graphsage_forward.1} parent=0 // pred_region
    _
  $region37: #{graphsage_forward.1} parent=0 // pred_fallthru
    _
  %v33 = vld [vmem:[%s0] sm:$0xf]
  %v34 = vld [vmem:[%s0 + $0x4] sm:$0xf]
  %v35 = vld [vmem:[%s0 + $0x8] sm:$0xf]
  %v36 = vld [vmem:[%s0 + $0xc] sm:$0xf]
  %v37 = vld [vmem:[%s0 + $0x10] sm:$0xf]
  %v38 = vld [vmem:[%s0 + $0x14] sm:$0xf]
  %v39 = vld [vmem:[%s0 + $0x18] sm:$0xf]
  %v40 = vld [vmem:[%s0 + $0x1c] sm:$0xf]
  %v41 = vld [vmem:[%s1] sm:$0xff]
  %v42 = vld [vmem:[%s1 + $0x8] sm:$0xff]
  %v43 = vld [vmem:[%s1 + $0x10] sm:$0xff]
  %v44 = vld [vmem:[%s1 + $0x18] sm:$0xff]
  %v45 = vld [vmem:[%s1 + $0x20] sm:$0xff]
  %v46 = vld [vmem:[%s1 + $0x28] sm:$0xff]
  %v47 = vld [vmem:[%s1 + $0x30] sm:$0xff]
  %v48 = vld [vmem:[%s1 + $0x38] sm:$0xff]
  %v49 = vpack.c.bf16 %v42, %v41
  %v50 = vpack.c.bf16 %v44, %v43
  %v51 = vpack.c.bf16 %v46, %v45
  %v52 = vpack.c.bf16 %v48, %v47
  %v61 = vunpack.c.l.b16 %v33
  %v62 = vunpack.c.l.b16 %v34
  %v63 = vunpack.c.l.b16 %v35
  %v64 = vunpack.c.l.b16 %v36
  %v65 = vunpack.c.l.b16 %v37
  %v66 = vunpack.c.l.b16 %v38
  %v67 = vunpack.c.l.b16 %v39
  %v68 = vunpack.c.l.b16 %v40
  %v69 = vpack.c.b16 %v62, %v61
  %v70 = vpack.c.b16 %v64, %v63
  %v71 = vpack.c.b16 %v66, %v65
  %v72 = vpack.c.b16 %v68, %v67
  %vm73 = vcmask 523264
  %v75 = vsel %vm73, %v69, 0
  %v78 = vsel %vm73, %v70, 0
  %v81 = vsel %vm73, %v71, 0
  %v84 = vsel %vm73, %v72, 0
  %86 = vmatpush.bf16.msra.mxu0 0
  %87 = vmatpush.bf16.msra.mxu0 0
  %88 = vmatpush.bf16.msra.mxu0 0
  %89 = vmatpush.bf16.msra.mxu0 0
  %90 = vmatpush.bf16.msra.mxu0 %v52
  %91 = vmatpush.bf16.msra.mxu0 %v51
  %92 = vmatpush.bf16.msra.mxu0 %v50
  %93 = vmatpush.bf16.msra.mxu0 %v49
  %94 = vmatmul.bf16.gmra.mxu0 %v75
  %v95 = vpop.f32.mrf.mxu0
  %v96 = vadd.f32 0.0, %v95
  %v97 = vpop.f32.mrf.mxu0
  %v98 = vadd.f32 0.0, %v97
  %99 = vmatmul.bf16.gmra.mxu0 %v78
  %v100 = vpop.f32.mrf.mxu0
  %v101 = vadd.f32 0.0, %v100
  %v102 = vpop.f32.mrf.mxu0
  %v103 = vadd.f32 0.0, %v102
  %104 = vmatmul.bf16.gmra.mxu0 %v81
  %v105 = vpop.f32.mrf.mxu0
  %v106 = vadd.f32 0.0, %v105
  %v107 = vpop.f32.mrf.mxu0
  %v108 = vadd.f32 0.0, %v107
  %109 = vmatmul.bf16.gmra.mxu0 %v84
  %v110 = vpop.f32.mrf.mxu0
  %v111 = vadd.f32 0.0, %v110
  %v112 = vpop.f32.mrf.mxu0
  %v113 = vadd.f32 0.0, %v112
  %114 = vdwg.mxu0
  %vm115 = vcmask 130048
  %116 = vst.msk [vmem:[#allocation2] sm:$0xff] %vm115, %v96
  %117 = vst.msk [vmem:[#allocation2 + $0x8] sm:$0xff] %vm115, %v98
  %118 = vst.msk [vmem:[#allocation2 + $0x10] sm:$0xff] %vm115, %v101
  %119 = vst.msk [vmem:[#allocation2 + $0x18] sm:$0xff] %vm115, %v103
  %120 = vst.msk [vmem:[#allocation2 + $0x20] sm:$0xff] %vm115, %v106
  %121 = vst.msk [vmem:[#allocation2 + $0x28] sm:$0xff] %vm115, %v108
  %122 = vst.msk [vmem:[#allocation2 + $0x30] sm:$0xff] %vm115, %v111
  %123 = vst.msk [vmem:[#allocation2 + $0x38] sm:$0xff] %vm115, %v113
  %132 = vrot.lane.b32.xlu0 %v41, 16
  %v133 = vpop.permute.xlu0 %132
  %134 = vrot.lane.b32.xlu0 %v42, 16
  %v135 = vpop.permute.xlu0 %134
  %136 = vrot.lane.b32.xlu0 %v43, 16
  %v137 = vpop.permute.xlu0 %136
  %138 = vrot.lane.b32.xlu0 %v44, 16
  %v139 = vpop.permute.xlu0 %138
  %140 = vrot.lane.b32.xlu0 %v45, 16
  %v141 = vpop.permute.xlu0 %140
  %142 = vrot.lane.b32.xlu0 %v46, 16
  %v143 = vpop.permute.xlu0 %142
  %144 = vrot.lane.b32.xlu0 %v47, 16
  %v145 = vpop.permute.xlu0 %144
  %146 = vrot.lane.b32.xlu0 %v48, 16
  %v147 = vpop.permute.xlu0 %146
  %vm156 = vcmask 261248
  %157 = vst.msk [vmem:[#allocation2] sm:$0xff] %vm156, %v133
  %158 = vst.msk [vmem:[#allocation2 + $0x8] sm:$0xff] %vm156, %v135
  %159 = vst.msk [vmem:[#allocation2 + $0x10] sm:$0xff] %vm156, %v137
  %160 = vst.msk [vmem:[#allocation2 + $0x18] sm:$0xff] %vm156, %v139
  %161 = vst.msk [vmem:[#allocation2 + $0x20] sm:$0xff] %vm156, %v141
  %162 = vst.msk [vmem:[#allocation2 + $0x28] sm:$0xff] %vm156, %v143
  %163 = vst.msk [vmem:[#allocation2 + $0x30] sm:$0xff] %vm156, %v145
  %164 = vst.msk [vmem:[#allocation2 + $0x38] sm:$0xff] %vm156, %v147
  %v165 = vld [vmem:[#allocation2] sm:$0xff]
  %v166 = vld [vmem:[#allocation2 + $0x8] sm:$0xff]
  %v167 = vld [vmem:[#allocation2 + $0x10] sm:$0xff]
  %v168 = vld [vmem:[#allocation2 + $0x18] sm:$0xff]
  %v169 = vld [vmem:[#allocation2 + $0x20] sm:$0xff]
  %v170 = vld [vmem:[#allocation2 + $0x28] sm:$0xff]
  %v171 = vld [vmem:[#allocation2 + $0x30] sm:$0xff]
  %v172 = vld [vmem:[#allocation2 + $0x38] sm:$0xff]
  %v173 = vld [vmem:[%s2] sm:$0xff]
  %v174 = vld [vmem:[%s2 + $0x8] sm:$0xff]
  %v175 = vld [vmem:[%s2 + $0x10] sm:$0xff]
  %v176 = vld [vmem:[%s2 + $0x18] sm:$0xff]
  %v177 = vld [vmem:[%s3] sm:$0x1]
  %v179 = vperm.slane %v177, 0
  %vm181 = vcmask 261120
  %v183 = vsel %vm181, %v165, 0
  %v186 = vsel %vm181, %v166, 0
  %v189 = vsel %vm181, %v167, 0
  %v192 = vsel %vm181, %v168, 0
  %v195 = vsel %vm181, %v169, 0
  %v198 = vsel %vm181, %v170, 0
  %v201 = vsel %vm181, %v171, 0
  %v204 = vsel %vm181, %v172, 0
  %206 = vmatpush.msra.mxu0 0.0
  %207 = vmatpush.msra.mxu0 0.0
  %208 = vmatpush.msra.mxu0 0.0
  %209 = vmatpush.msra.mxu0 0.0
  %210 = vmatpush.msra.mxu0 0.0
  %211 = vmatpush.msra.mxu0 0.0
  %212 = vmatpush.msra.mxu0 0.0
  %213 = vmatpush.msra.mxu0 0.0
  %214 = vmatpush.msra.mxu0 0.0
  %215 = vmatpush.msra.mxu0 0.0
  %216 = vmatpush.msra.mxu0 0.0
  %217 = vmatpush.msra.mxu0 0.0
  %218 = vmatpush.msra.mxu0 %v176
  %219 = vmatpush.msra.mxu0 %v175
  %220 = vmatpush.msra.mxu0 %v174
  %221 = vmatpush.msra.mxu0 %v173
  %222 = vmatmul.f32.gmra.mxu0 %v183
  %v223 = vpop.f32.mrf.mxu0
  %v224 = vadd.f32 %v179, %v223
  %225 = vmatmul.f32.gmra.mxu0 %v186
  %v226 = vpop.f32.mrf.mxu0
  %v227 = vadd.f32 %v179, %v226
  %228 = vmatmul.f32.gmra.mxu0 %v189
  %v229 = vpop.f32.mrf.mxu0
  %v230 = vadd.f32 %v179, %v229
  %231 = vmatmul.f32.gmra.mxu0 %v192
  %v232 = vpop.f32.mrf.mxu0
  %v233 = vadd.f32 %v179, %v232
  %234 = vmatmul.f32.gmra.mxu0 %v195
  %v235 = vpop.f32.mrf.mxu0
  %v236 = vadd.f32 %v179, %v235
  %237 = vmatmul.f32.gmra.mxu0 %v198
  %v238 = vpop.f32.mrf.mxu0
  %v239 = vadd.f32 %v179, %v238
  %240 = vmatmul.f32.gmra.mxu0 %v201
  %v241 = vpop.f32.mrf.mxu0
  %v242 = vadd.f32 %v179, %v241
  %243 = vmatmul.f32.gmra.mxu0 %v204
  %v244 = vpop.f32.mrf.mxu0
  %v245 = vadd.f32 %v179, %v244
  %246 = vdwg.mxu0
  %v247 = vmax.f32 %v224, 0.0
  %v248 = vmax.f32 %v227, 0.0
  %v249 = vmax.f32 %v230, 0.0
  %v250 = vmax.f32 %v233, 0.0
  %v251 = vmax.f32 %v236, 0.0
  %v252 = vmax.f32 %v239, 0.0
  %v253 = vmax.f32 %v242, 0.0
  %v254 = vmax.f32 %v245, 0.0
  %v255 = vpack.c.bf16 %v248, %v247
  %v256 = vpack.c.bf16 %v250, %v249
  %v257 = vpack.c.bf16 %v252, %v251
  %v258 = vpack.c.bf16 %v254, %v253
  %259 = vmatpush.bf16.msra.mxu0 0
  %260 = vmatpush.bf16.msra.mxu0 0
  %261 = vmatpush.bf16.msra.mxu0 0
  %262 = vmatpush.bf16.msra.mxu0 0
  %263 = vmatpush.bf16.msra.mxu0 %v258
  %264 = vmatpush.bf16.msra.mxu0 %v257
  %265 = vmatpush.bf16.msra.mxu0 %v256
  %266 = vmatpush.bf16.msra.mxu0 %v255
  %267 = vmatmul.bf16.gmra.mxu0 %v75
  %v268 = vpop.f32.mrf.mxu0
  %v269 = vadd.f32 0.0, %v268
  %v270 = vpop.f32.mrf.mxu0
  %v271 = vadd.f32 0.0, %v270
  %272 = vmatmul.bf16.gmra.mxu0 %v78
  %v273 = vpop.f32.mrf.mxu0
  %v274 = vadd.f32 0.0, %v273
  %v275 = vpop.f32.mrf.mxu0
  %v276 = vadd.f32 0.0, %v275
  %277 = vmatmul.bf16.gmra.mxu0 %v81
  %v278 = vpop.f32.mrf.mxu0
  %v279 = vadd.f32 0.0, %v278
  %v280 = vpop.f32.mrf.mxu0
  %v281 = vadd.f32 0.0, %v280
  %282 = vmatmul.bf16.gmra.mxu0 %v84
  %v283 = vpop.f32.mrf.mxu0
  %v284 = vadd.f32 0.0, %v283
  %v285 = vpop.f32.mrf.mxu0
  %v286 = vadd.f32 0.0, %v285
  %287 = vdwg.mxu0
  %288 = vst.msk [vmem:[#allocation2] sm:$0xff] %vm181, %v269
  %289 = vst.msk [vmem:[#allocation2 + $0x8] sm:$0xff] %vm181, %v271
  %290 = vst.msk [vmem:[#allocation2 + $0x10] sm:$0xff] %vm181, %v274
  %291 = vst.msk [vmem:[#allocation2 + $0x18] sm:$0xff] %vm181, %v276
  %292 = vst.msk [vmem:[#allocation2 + $0x20] sm:$0xff] %vm181, %v279
  %293 = vst.msk [vmem:[#allocation2 + $0x28] sm:$0xff] %vm181, %v281
  %294 = vst.msk [vmem:[#allocation2 + $0x30] sm:$0xff] %vm181, %v284
  %295 = vst.msk [vmem:[#allocation2 + $0x38] sm:$0xff] %vm181, %v286
  %304 = vrot.lane.b32.xlu0 %v247, 32
  %v305 = vpop.permute.xlu0 %304
  %306 = vrot.lane.b32.xlu0 %v248, 32
  %v307 = vpop.permute.xlu0 %306
  %308 = vrot.lane.b32.xlu0 %v249, 32
  %v309 = vpop.permute.xlu0 %308
  %310 = vrot.lane.b32.xlu0 %v250, 32
  %v311 = vpop.permute.xlu0 %310
  %312 = vrot.lane.b32.xlu0 %v251, 32
  %v313 = vpop.permute.xlu0 %312
  %314 = vrot.lane.b32.xlu0 %v252, 32
  %v315 = vpop.permute.xlu0 %314
  %316 = vrot.lane.b32.xlu0 %v253, 32
  %v317 = vpop.permute.xlu0 %316
  %318 = vrot.lane.b32.xlu0 %v254, 32
  %v319 = vpop.permute.xlu0 %318
  %vm328 = vcmask 523520
  %329 = vst.msk [vmem:[#allocation2] sm:$0xff] %vm328, %v305
  %330 = vst.msk [vmem:[#allocation2 + $0x8] sm:$0xff] %vm328, %v307
  %331 = vst.msk [vmem:[#allocation2 + $0x10] sm:$0xff] %vm328, %v309
  %332 = vst.msk [vmem:[#allocation2 + $0x18] sm:$0xff] %vm328, %v311
  %333 = vst.msk [vmem:[#allocation2 + $0x20] sm:$0xff] %vm328, %v313
  %334 = vst.msk [vmem:[#allocation2 + $0x28] sm:$0xff] %vm328, %v315
  %335 = vst.msk [vmem:[#allocation2 + $0x30] sm:$0xff] %vm328, %v317
  %336 = vst.msk [vmem:[#allocation2 + $0x38] sm:$0xff] %vm328, %v319
  %v337 = vld [vmem:[#allocation2] sm:$0xff]
  %v338 = vld [vmem:[#allocation2 + $0x8] sm:$0xff]
  %v339 = vld [vmem:[#allocation2 + $0x10] sm:$0xff]
  %v340 = vld [vmem:[#allocation2 + $0x18] sm:$0xff]
  %v341 = vld [vmem:[#allocation2 + $0x20] sm:$0xff]
  %v342 = vld [vmem:[#allocation2 + $0x28] sm:$0xff]
  %v343 = vld [vmem:[#allocation2 + $0x30] sm:$0xff]
  %v344 = vld [vmem:[#allocation2 + $0x38] sm:$0xff]
  %v345 = vld [vmem:[%s4] sm:$0xff]
  %v346 = vld [vmem:[%s4 + $0x8] sm:$0xff]
  %v347 = vld [vmem:[%s4 + $0x10] sm:$0xff]
  %v348 = vld [vmem:[%s4 + $0x18] sm:$0xff]
  %v349 = vld [vmem:[%s4 + $0x20] sm:$0xff]
  %v350 = vld [vmem:[%s4 + $0x28] sm:$0xff]
  %v351 = vld [vmem:[%s4 + $0x30] sm:$0xff]
  %v352 = vld [vmem:[%s4 + $0x38] sm:$0xff]
  %v353 = vld [vmem:[%s5] sm:$0x1]
  %v355 = vperm.slane %v353, 0
  %v358 = vsel %vm73, %v337, 0
  %v361 = vsel %vm73, %v338, 0
  %v364 = vsel %vm73, %v339, 0
  %v367 = vsel %vm73, %v340, 0
  %v370 = vsel %vm73, %v341, 0
  %v373 = vsel %vm73, %v342, 0
  %v376 = vsel %vm73, %v343, 0
  %v379 = vsel %vm73, %v344, 0
  %381 = vmatpush.msra.mxu0 0.0
  %382 = vmatpush.msra.mxu0 0.0
  %383 = vmatpush.msra.mxu0 0.0
  %384 = vmatpush.msra.mxu0 0.0
  %385 = vmatpush.msra.mxu0 0.0
  %386 = vmatpush.msra.mxu0 0.0
  %387 = vmatpush.msra.mxu0 0.0
  %388 = vmatpush.msra.mxu0 0.0
  %389 = vmatpush.msra.mxu0 %v352
  %390 = vmatpush.msra.mxu0 %v351
  %391 = vmatpush.msra.mxu0 %v350
  %392 = vmatpush.msra.mxu0 %v349
  %393 = vmatpush.msra.mxu0 %v348
  %394 = vmatpush.msra.mxu0 %v347
  %395 = vmatpush.msra.mxu0 %v346
  %396 = vmatpush.msra.mxu0 %v345
  %397 = vmatmul.f32.gmra.mxu0 %v358
  %v398 = vpop.f32.mrf.mxu0
  %v399 = vadd.f32 %v355, %v398
  %400 = vmatmul.f32.gmra.mxu0 %v361
  %v401 = vpop.f32.mrf.mxu0
  %v402 = vadd.f32 %v355, %v401
  %403 = vmatmul.f32.gmra.mxu0 %v364
  %v404 = vpop.f32.mrf.mxu0
  %v405 = vadd.f32 %v355, %v404
  %406 = vmatmul.f32.gmra.mxu0 %v367
  %v407 = vpop.f32.mrf.mxu0
  %v408 = vadd.f32 %v355, %v407
  %409 = vmatmul.f32.gmra.mxu0 %v370
  %v410 = vpop.f32.mrf.mxu0
  %v411 = vadd.f32 %v355, %v410
  %412 = vmatmul.f32.gmra.mxu0 %v373
  %v413 = vpop.f32.mrf.mxu0
  %v414 = vadd.f32 %v355, %v413
  %415 = vmatmul.f32.gmra.mxu0 %v376
  %v416 = vpop.f32.mrf.mxu0
  %v417 = vadd.f32 %v355, %v416
  %418 = vmatmul.f32.gmra.mxu0 %v379
  %v419 = vpop.f32.mrf.mxu0
  %v420 = vadd.f32 %v355, %v419
  %421 = vdwg.mxu0
  %v422 = vmax.f32 %v399, 0.0
  %v423 = vmax.f32 %v402, 0.0
  %v424 = vmax.f32 %v405, 0.0
  %v425 = vmax.f32 %v408, 0.0
  %v426 = vmax.f32 %v411, 0.0
  %v427 = vmax.f32 %v414, 0.0
  %v428 = vmax.f32 %v417, 0.0
  %v429 = vmax.f32 %v420, 0.0
  %v430 = vld [vmem:[%s6] sm:$0xff]
  %v431 = vld [vmem:[%s6 + $0x8] sm:$0xff]
  %v432 = vld [vmem:[%s6 + $0x10] sm:$0xff]
  %v433 = vld [vmem:[%s6 + $0x18] sm:$0xff]
  %v435 = vsel %vm181, %v422, 0
  %v438 = vsel %vm181, %v423, 0
  %v441 = vsel %vm181, %v424, 0
  %v444 = vsel %vm181, %v425, 0
  %v447 = vsel %vm181, %v426, 0
  %v450 = vsel %vm181, %v427, 0
  %v453 = vsel %vm181, %v428, 0
  %v456 = vsel %vm181, %v429, 0
  %458 = vmatpush.msra.mxu0 0.0
  %459 = vmatpush.msra.mxu0 0.0
  %460 = vmatpush.msra.mxu0 0.0
  %461 = vmatpush.msra.mxu0 0.0
  %462 = vmatpush.msra.mxu0 0.0
  %463 = vmatpush.msra.mxu0 0.0
  %464 = vmatpush.msra.mxu0 0.0
  %465 = vmatpush.msra.mxu0 0.0
  %466 = vmatpush.msra.mxu0 0.0
  %467 = vmatpush.msra.mxu0 0.0
  %468 = vmatpush.msra.mxu0 0.0
  %469 = vmatpush.msra.mxu0 0.0
  %470 = vmatpush.msra.mxu0 %v433
  %471 = vmatpush.msra.mxu0 %v432
  %472 = vmatpush.msra.mxu0 %v431
  %473 = vmatpush.msra.mxu0 %v430
  %474 = vmatmul.f32.gmra.mxu0 %v435
  %v475 = vpop.f32.mrf.mxu0
  %v476 = vadd.f32 0.0, %v475
  %477 = vmatmul.f32.gmra.mxu0 %v438
  %v478 = vpop.f32.mrf.mxu0
  %v479 = vadd.f32 0.0, %v478
  %480 = vmatmul.f32.gmra.mxu0 %v441
  %v481 = vpop.f32.mrf.mxu0
  %v482 = vadd.f32 0.0, %v481
  %483 = vmatmul.f32.gmra.mxu0 %v444
  %v484 = vpop.f32.mrf.mxu0
  %v485 = vadd.f32 0.0, %v484
  %486 = vmatmul.f32.gmra.mxu0 %v447
  %v487 = vpop.f32.mrf.mxu0
  %v488 = vadd.f32 0.0, %v487
  %489 = vmatmul.f32.gmra.mxu0 %v450
  %v490 = vpop.f32.mrf.mxu0
  %v491 = vadd.f32 0.0, %v490
  %492 = vmatmul.f32.gmra.mxu0 %v453
  %v493 = vpop.f32.mrf.mxu0
  %v494 = vadd.f32 0.0, %v493
  %495 = vmatmul.f32.gmra.mxu0 %v456
  %v496 = vpop.f32.mrf.mxu0
  %v497 = vadd.f32 0.0, %v496
  %498 = vdwg.mxu0
  %v499 = vpack.c.bf16 %v479, %v476
  %v500 = vpack.c.bf16 %v485, %v482
  %v501 = vpack.c.bf16 %v491, %v488
  %v502 = vpack.c.bf16 %v497, %v494
  %v503 = vld [vmem:[%s7] sm:$0xff]
  %v504 = vld [vmem:[%s7 + $0x8] sm:$0xff]
  %v505 = vld [vmem:[%s7 + $0x10] sm:$0xff]
  %v506 = vld [vmem:[%s7 + $0x18] sm:$0xff]
  %507 = vmatpush.msra.mxu0 0.0
  %508 = vmatpush.msra.mxu0 0.0
  %509 = vmatpush.msra.mxu0 0.0
  %510 = vmatpush.msra.mxu0 0.0
  %511 = vmatpush.msra.mxu0 0.0
  %512 = vmatpush.msra.mxu0 0.0
  %513 = vmatpush.msra.mxu0 0.0
  %514 = vmatpush.msra.mxu0 0.0
  %515 = vmatpush.msra.mxu0 0.0
  %516 = vmatpush.msra.mxu0 0.0
  %517 = vmatpush.msra.mxu0 0.0
  %518 = vmatpush.msra.mxu0 0.0
  %519 = vmatpush.msra.mxu0 %v506
  %520 = vmatpush.msra.mxu0 %v505
  %521 = vmatpush.msra.mxu0 %v504
  %522 = vmatpush.msra.mxu0 %v503
  %523 = vmatmul.f32.gmra.mxu0 %v435
  %v524 = vpop.f32.mrf.mxu0
  %v525 = vadd.f32 0.0, %v524
  %526 = vmatmul.f32.gmra.mxu0 %v438
  %v527 = vpop.f32.mrf.mxu0
  %v528 = vadd.f32 0.0, %v527
  %529 = vmatmul.f32.gmra.mxu0 %v441
  %v530 = vpop.f32.mrf.mxu0
  %v531 = vadd.f32 0.0, %v530
  %532 = vmatmul.f32.gmra.mxu0 %v444
  %v533 = vpop.f32.mrf.mxu0
  %v534 = vadd.f32 0.0, %v533
  %535 = vmatmul.f32.gmra.mxu0 %v447
  %v536 = vpop.f32.mrf.mxu0
  %v537 = vadd.f32 0.0, %v536
  %538 = vmatmul.f32.gmra.mxu0 %v450
  %v539 = vpop.f32.mrf.mxu0
  %v540 = vadd.f32 0.0, %v539
  %541 = vmatmul.f32.gmra.mxu0 %v453
  %v542 = vpop.f32.mrf.mxu0
  %v543 = vadd.f32 0.0, %v542
  %544 = vmatmul.f32.gmra.mxu0 %v456
  %v545 = vpop.f32.mrf.mxu0
  %v546 = vadd.f32 0.0, %v545
  %547 = vdwg.mxu0
  %548 = vmatpush.bf16.msra.mxu0 0
  %549 = vmatpush.bf16.msra.mxu0 0
  %550 = vmatpush.bf16.msra.mxu0 0
  %551 = vmatpush.bf16.msra.mxu0 0
  %552 = vmatpush.bf16.msra.mxu0 %v502
  %553 = vmatpush.bf16.msra.mxu0 %v501
  %554 = vmatpush.bf16.msra.mxu0 %v500
  %555 = vmatpush.bf16.msra.mxu0 %v499
  %556 = vmatmul.bf16.gmra.mxu0 %v75
  %v557 = vpop.f32.mrf.mxu0
  %v558 = vadd.f32 %v525, %v557
  %v559 = vpop.f32.mrf.mxu0
  %v560 = vadd.f32 %v528, %v559
  %561 = vmatmul.bf16.gmra.mxu0 %v78
  %v562 = vpop.f32.mrf.mxu0
  %v563 = vadd.f32 %v531, %v562
  %v564 = vpop.f32.mrf.mxu0
  %v565 = vadd.f32 %v534, %v564
  %566 = vmatmul.bf16.gmra.mxu0 %v81
  %v567 = vpop.f32.mrf.mxu0
  %v568 = vadd.f32 %v537, %v567
  %v569 = vpop.f32.mrf.mxu0
  %v570 = vadd.f32 %v540, %v569
  %571 = vmatmul.bf16.gmra.mxu0 %v84
  %v572 = vpop.f32.mrf.mxu0
  %v573 = vadd.f32 %v543, %v572
  %v574 = vpop.f32.mrf.mxu0
  %v575 = vadd.f32 %v546, %v574
  %576 = vdwg.mxu0
  %v577 = vld [vmem:[%s8] sm:$0x1]
  %v579 = vperm.slane %v577, 0
  %v581 = vadd.f32 %v558, %v579
  %v582 = vadd.f32 %v560, %v579
  %v583 = vadd.f32 %v563, %v579
  %v584 = vadd.f32 %v565, %v579
  %v585 = vadd.f32 %v568, %v579
  %v586 = vadd.f32 %v570, %v579
  %v587 = vadd.f32 %v573, %v579
  %v588 = vadd.f32 %v575, %v579
  %vm589 = vcmask 64512
  %v590 = vsel %vm589, %v581, -inf
  %591 = vmax.xlane.f32.xlu0 %v590
  %v592 = vpop.xlane.xlu0 %591
  %v593 = vsel %vm589, %v582, -inf
  %594 = vmax.xlane.f32.xlu0 %v593
  %v595 = vpop.xlane.xlu0 %594
  %v596 = vsel %vm589, %v583, -inf
  %597 = vmax.xlane.f32.xlu0 %v596
  %v598 = vpop.xlane.xlu0 %597
  %v599 = vsel %vm589, %v584, -inf
  %600 = vmax.xlane.f32.xlu0 %v599
  %v601 = vpop.xlane.xlu0 %600
  %v602 = vsel %vm589, %v585, -inf
  %603 = vmax.xlane.f32.xlu0 %v602
  %v604 = vpop.xlane.xlu0 %603
  %v605 = vsel %vm589, %v586, -inf
  %606 = vmax.xlane.f32.xlu0 %v605
  %v607 = vpop.xlane.xlu0 %606
  %v608 = vsel %vm589, %v587, -inf
  %609 = vmax.xlane.f32.xlu0 %v608
  %v610 = vpop.xlane.xlu0 %609
  %v611 = vsel %vm589, %v588, -inf
  %612 = vmax.xlane.f32.xlu0 %v611
  %v613 = vpop.xlane.xlu0 %612
  %v614 = vsub.f32 %v581, %v592
  %v615 = vsub.f32 %v582, %v595
  %v616 = vsub.f32 %v583, %v598
  %v617 = vsub.f32 %v584, %v601
  %v618 = vsub.f32 %v585, %v604
  %v619 = vsub.f32 %v586, %v607
  %v620 = vsub.f32 %v587, %v610
  %v621 = vsub.f32 %v588, %v613
  %v622 = vmul.f32 %v614, 1.442695
  %v623 = vpow.pop %v622
  %v624 = vmul.f32 %v615, 1.442695
  %v625 = vpow.pop %v624
  %v626 = vmul.f32 %v616, 1.442695
  %v627 = vpow.pop %v626
  %v628 = vmul.f32 %v617, 1.442695
  %v629 = vpow.pop %v628
  %v630 = vmul.f32 %v618, 1.442695
  %v631 = vpow.pop %v630
  %v632 = vmul.f32 %v619, 1.442695
  %v633 = vpow.pop %v632
  %v634 = vmul.f32 %v620, 1.442695
  %v635 = vpow.pop %v634
  %v636 = vmul.f32 %v621, 1.442695
  %v637 = vpow.pop %v636
  %v638 = vsel %vm589, %v623, 0.0
  %639 = vadd.xlane.f32.xlu0 %v638
  %v640 = vpop.xlane.xlu0 %639
  %v641 = vsel %vm589, %v625, 0.0
  %642 = vadd.xlane.f32.xlu0 %v641
  %v643 = vpop.xlane.xlu0 %642
  %v644 = vsel %vm589, %v627, 0.0
  %645 = vadd.xlane.f32.xlu0 %v644
  %v646 = vpop.xlane.xlu0 %645
  %v647 = vsel %vm589, %v629, 0.0
  %648 = vadd.xlane.f32.xlu0 %v647
  %v649 = vpop.xlane.xlu0 %648
  %v650 = vsel %vm589, %v631, 0.0
  %651 = vadd.xlane.f32.xlu0 %v650
  %v652 = vpop.xlane.xlu0 %651
  %v653 = vsel %vm589, %v633, 0.0
  %654 = vadd.xlane.f32.xlu0 %v653
  %v655 = vpop.xlane.xlu0 %654
  %v656 = vsel %vm589, %v635, 0.0
  %657 = vadd.xlane.f32.xlu0 %v656
  %v658 = vpop.xlane.xlu0 %657
  %v659 = vsel %vm589, %v637, 0.0
  %660 = vadd.xlane.f32.xlu0 %v659
  %v661 = vpop.xlane.xlu0 %660
  %v662 = vlog2.pop %v640
  %v663 = vmul.f32 %v662, 0.6931472
  %v664 = vlog2.pop %v643
  %v665 = vmul.f32 %v664, 0.6931472
  %v666 = vlog2.pop %v646
  %v667 = vmul.f32 %v666, 0.6931472
  %v668 = vlog2.pop %v649
  %v669 = vmul.f32 %v668, 0.6931472
  %v670 = vlog2.pop %v652
  %v671 = vmul.f32 %v670, 0.6931472
  %v672 = vlog2.pop %v655
  %v673 = vmul.f32 %v672, 0.6931472
  %v674 = vlog2.pop %v658
  %v675 = vmul.f32 %v674, 0.6931472
  %v676 = vlog2.pop %v661
  %v677 = vmul.f32 %v676, 0.6931472
  %v678 = vsub.f32 %v614, %v663
  %v679 = vsub.f32 %v615, %v665
  %v680 = vsub.f32 %v616, %v667
  %v681 = vsub.f32 %v617, %v669
  %v682 = vsub.f32 %v618, %v671
  %v683 = vsub.f32 %v619, %v673
  %v684 = vsub.f32 %v620, %v675
  %v685 = vsub.f32 %v621, %v677
  %686 = vst.msk [vmem:[%s9] sm:$0xff] %vm589, %v678
  %687 = vst.msk [vmem:[%s9 + $0x8] sm:$0xff] %vm589, %v679
  %688 = vst.msk [vmem:[%s9 + $0x10] sm:$0xff] %vm589, %v680
  %689 = vst.msk [vmem:[%s9 + $0x18] sm:$0xff] %vm589, %v681
  %690 = vst.msk [vmem:[%s9 + $0x20] sm:$0xff] %vm589, %v682
  %691 = vst.msk [vmem:[%s9 + $0x28] sm:$0xff] %vm589, %v683
  %692 = vst.msk [vmem:[%s9 + $0x30] sm:$0xff] %vm589, %v684
  %693 = vst.msk [vmem:[%s9 + $0x38] sm:$0xff] %vm589, %v685
  // Predicated region
  $region38: #{graphsage_forward.1} parent=0 // pred_check
    _
  $region39: #{graphsage_forward.1} parent=0 // pred_check_branch
    %695 = sbr.rel (0) target = $region41
  $region40: #{graphsage_forward.1} parent=0 // pred_region
    _
  $region41: #{graphsage_forward.1} parent=0 // pred_fallthru
    _
  // Predicated region
  $region42: #{graphsage_forward.1} parent=0 // pred_check
    _
  $region43: #{graphsage_forward.1} parent=0 // pred_check_branch
    %697 = sbr.rel (0) target = $region45
  $region44: #{graphsage_forward.1} parent=0 // pred_region
    _
  $region45: #{graphsage_forward.1} parent=0 // pred_fallthru
    _

</llo_original>
